<compile_context>
chip_gen: v6e
topology: v6e:2x2x1
jax: 0.10.0
libtpu: 0.0.40
codegen_flags: <defaults>
</compile_context>

<pallas_src>
import functools

import jax
import jax.numpy as jnp
from jax.experimental import pallas as pl
from jax.experimental.pallas import tpu as pltpu

LANE = 128
DEFAULT_BLOCK_ROWS = 4096   # 4096 x 128 f32 = 2 MiB per stream per buffer
NUM_CORE_CHUNKS = 2         # leading "parallel" grid axis (megacore on v7x)


def _focal_loss_kernel(p_ref, t_ref, out_ref, *,
                       gamma, logits, binary_targets,
                       block_rows, blocks_per_core, total_blocks,
                       tail_count, need_tail_mask, need_skip):
    c = pl.program_id(0)           # core-chunk axis ("parallel")
    s = pl.program_id(1)           # streaming axis   ("arbitrary")
    gb = c * blocks_per_core + s   # global block index (small, int32-safe)

    @pl.when(s == 0)
    def _():
        out_ref[...] = jnp.zeros_like(out_ref)

    x = p_ref[...].astype(jnp.float32)
    t = t_ref[...].astype(jnp.float32)

    valid = None
    if need_tail_mask:
        # Block-local flat offset (<= block_rows*128 <= 524288, fits int32)
        # compared against a per-block limit: only the last real block has a
        # limit below block_elems.  No global flat index -> no overflow even
        # for arrays with >2^31 elements.
        block_elems = block_rows * LANE
        limit = jnp.where(gb == total_blocks - 1,
                          jnp.int32(tail_count), jnp.int32(block_elems))
        row_l = jax.lax.broadcasted_iota(jnp.int32, (block_rows, LANE), 0)
        col_l = jax.lax.broadcasted_iota(jnp.int32, (block_rows, LANE), 1)
        valid = (row_l * LANE + col_l) < limit
        # Sanitize BEFORE the transcendentals: log(garbage) could be NaN and
        # NaN * 0 == NaN would poison the sum.
        x = jnp.where(valid, x, 0.5)
        t = jnp.where(valid, t, 0.5)

    if logits:
        # Numerically stable BCE-with-logits:
        #   max(x, 0) - x*t + log(1 + exp(-|x|))
        bce = jnp.maximum(x, 0.0) - x * t + jnp.log1p(jnp.exp(-jnp.abs(x)))
        pt = jnp.exp(-bce)
    elif binary_targets:
        # Hard {0,1} targets: pt directly, 1 EUP op/element instead of 3.
        pt = jnp.where(t > 0.5, x, 1.0 - x)
        bce = -jnp.maximum(jnp.log(pt), -100.0)
    else:
        # PyTorch F.binary_cross_entropy clamps log terms at -100.
        log_p = jnp.maximum(jnp.log(x), -100.0)
        log_1mp = jnp.maximum(jnp.log(1.0 - x), -100.0)
        bce = -(t * log_p + (1.0 - t) * log_1mp)
        pt = jnp.exp(-bce)

    w = 1.0 - pt

    # Focal weight (1 - pt) ** gamma: integer-power fast path keeps the EUP
    # free (no exp(gamma*log(.))) and avoids NaN when 1-pt rounds negative.
    g = float(gamma)
    if g == round(g) and 0.0 <= g <= 8.0:
        gi = int(round(g))
        if gi == 0:
            wp = jnp.ones_like(w)
        else:
            wp = w
            for _ in range(gi - 1):
                wp = wp * w
    else:
        wp = jnp.power(jnp.maximum(w, 0.0), g)

    f_loss = wp * bce              # alpha folded into the wrapper-side scale
    if need_tail_mask:
        f_loss = jnp.where(valid, f_loss, 0.0)

    # Per-tile partial reduce on the VPU: (block_rows,128) -> (rows/8,8,128)
    # (tile-aligned, free regrouping) -> elementwise sum over the leading
    # axis -> (8,128).  Cross-lane/sublane reduce happens once in the wrapper.
    partial = jnp.sum(f_loss.reshape(block_rows // 8, 8, LANE), axis=0)

    if need_skip:
        # Duplicate block from an uneven core split: skip the accumulate with
        # a cheap scalar branch (the clamped re-read DMA is at most 1 block).
        @pl.when(gb < total_blocks)
        def _():
            out_ref[...] = out_ref[...] + partial[None, :, :]
    else:
        out_ref[...] = out_ref[...] + partial[None, :, :]


def focal_loss(inputs, targets, *, alpha=1.0, gamma=2.0, logits=False,
               reduce=True, binary_targets=False):
    """JAX/Pallas equivalent of FocalLoss.forward (reduce=True path).

    binary_targets=True enables a mathematically-equivalent-for-{0,1}-targets
    fast path (1 transcendental/element instead of 3 when logits=False).
    """
    assert inputs.shape == targets.shape
    if not reduce:
        # TODO(synk): unreduced per-element output path not implemented;
        # default module config uses reduce=True.
        raise NotImplementedError("reduce=False path not implemented")

    n = int(inputs.size)

    # Sublane granularity from the narrowest streamed dtype (8 for 4-byte,
    # 16 for 2-byte, 32 for 1-byte) so packed tiles stay aligned.
    min_bytes = min(jnp.dtype(inputs.dtype).itemsize,
                    jnp.dtype(targets.dtype).itemsize)
    row_gran = {4: 8, 2: 16, 1: 32}.get(int(min_bytes), 8)
    align = row_gran * LANE

    # Flatten row-major in native dtype (reshape of contiguous data is free).
    # Pad only to the sublane-tile boundary; for typical NCHW sizes this is a
    # no-op (no HBM copy materialized).
    flat_p = jnp.ravel(inputs)
    flat_t = jnp.ravel(targets)
    pad = (-n) % align
    if pad:
        flat_p = jnp.pad(flat_p, (0, pad))
        flat_t = jnp.pad(flat_t, (0, pad))
    rows = (n + pad) // LANE

    p2 = flat_p.reshape(rows, LANE)
    t2 = flat_t.reshape(rows, LANE)

    # Big lane-dense blocks (2 MiB f32) amortize the per-grid-step overhead;
    # 2 streams x 2 buffers x 2 MiB = 8 MiB fits every generation's default
    # scoped-VMEM limit (incl. v5e's 16 MiB), so no vmem_limit_bytes needed.
    block_rows = min(DEFAULT_BLOCK_ROWS, rows)
    total_blocks = -(-rows // block_rows)

    # Split blocks across a leading "parallel" axis: ~2x on v7x (2 TCs),
    # negligible cost on v5e/v6e (single TC just iterates both chunks).
    num_chunks = min(NUM_CORE_CHUNKS, total_blocks)
    blocks_per_core = -(-total_blocks // num_chunks)
    need_skip = (num_chunks * blocks_per_core) != total_blocks

    covered = total_blocks * block_rows * LANE
    need_tail_mask = (covered != n)
    tail_count = n - (total_blocks - 1) * block_rows * LANE  # Python int > 0

    if need_skip:
        def in_index_map(c, s):
            return (jnp.minimum(c * blocks_per_core + s, total_blocks - 1), 0)
    else:
        def in_index_map(c, s):
            return (c * blocks_per_core + s, 0)

    kernel = functools.partial(
        _focal_loss_kernel,
        gamma=float(gamma), logits=bool(logits),
        binary_targets=bool(binary_targets),
        block_rows=block_rows, blocks_per_core=blocks_per_core,
        total_blocks=total_blocks, tail_count=tail_count,
        need_tail_mask=need_tail_mask, need_skip=need_skip)

    partials = pl.pallas_call(
        kernel,
        out_shape=jax.ShapeDtypeStruct((num_chunks, 8, LANE), jnp.float32),
        grid_spec=pltpu.PrefetchScalarGridSpec(
            num_scalar_prefetch=0,
            grid=(num_chunks, blocks_per_core),
            in_specs=[
                pl.BlockSpec((block_rows, LANE), in_index_map),
                pl.BlockSpec((block_rows, LANE), in_index_map),
            ],
            # Lane-dense per-core partial-sum block, resident across the
            # "arbitrary" axis (output-as-accumulator).
            out_specs=pl.BlockSpec((1, 8, LANE), lambda c, s: (c, 0, 0)),
        ),
        compiler_params=pltpu.CompilerParams(
            dimension_semantics=("parallel", "arbitrary")),
    )(p2, t2)

    # Cross-core + cross-lane reduce and the (alpha / N) scale, once.
    return jnp.sum(partials) * jnp.float32(float(alpha) / float(n))


def _ref_focal_loss(inputs, targets, alpha=1.0, gamma=2, logits=False):
    x = inputs.astype(jnp.float32)
    t = targets.astype(jnp.float32)
    if logits:
        bce = jnp.maximum(x, 0.0) - x * t + jnp.log1p(jnp.exp(-jnp.abs(x)))
    else:
        log_p = jnp.maximum(jnp.log(x), -100.0)
        log_1mp = jnp.maximum(jnp.log(1.0 - x), -100.0)
        bce = -(t * log_p + (1.0 - t) * log_1mp)
    pt = jnp.exp(-bce)
    return jnp.mean(alpha * (1.0 - pt) ** gamma * bce)


if __name__ == "__main__":
    key = jax.random.PRNGKey(0)
    k1, k2, k3, k4, k5, k6 = jax.random.split(key, 6)

    # 1) Small NCHW probability map, default FocalLoss config (exact path).
    shape = (2, 4, 16, 16)
    p = jax.random.uniform(k1, shape, jnp.float32, 1e-4, 1.0 - 1e-4)
    t = (jax.random.uniform(k2, shape, jnp.float32) > 0.5).astype(jnp.float32)
    loss = jax.block_until_ready(focal_loss(p, t, alpha=1.0, gamma=2))
    ref = _ref_focal_loss(p, t, alpha=1.0, gamma=2)
    assert jnp.allclose(loss, ref, rtol=1e-5, atol=1e-6), (loss, ref)

    # 1b) Binary-target fast path (1 transcendental / element).
    loss_b = jax.block_until_ready(
        focal_loss(p, t, alpha=1.0, gamma=2, binary_targets=True))
    assert jnp.allclose(loss_b, ref, rtol=1e-4, atol=1e-6), (loss_b, ref)

    # 2) Ragged element count (exercises the compile-time-gated tail mask),
    #    non-default alpha / gamma.
    shape2 = (3, 5, 7, 11)
    p2 = jax.random.uniform(k3, shape2, jnp.float32, 1e-4, 1.0 - 1e-4)
    t2 = (jax.random.uniform(k4, shape2, jnp.float32) > 0.5).astype(jnp.float32)
    loss2 = jax.block_until_ready(focal_loss(p2, t2, alpha=0.5, gamma=3))
    ref2 = _ref_focal_loss(p2, t2, alpha=0.5, gamma=3)
    assert jnp.allclose(loss2, ref2, rtol=1e-5, atol=1e-6), (loss2, ref2)

    # 3) Multi-block input that splits across the leading "parallel" core
    #    axis (2 chunks) and has a ragged tail.
    shape3 = (4, 4, 180, 200)
    p3 = jax.random.uniform(k5, shape3, jnp.float32, 1e-4, 1.0 - 1e-4)
    t3 = (jax.random.uniform(k6, shape3, jnp.float32) > 0.5).astype(jnp.float32)
    loss3 = jax.block_until_ready(
        focal_loss(p3, t3, alpha=1.0, gamma=2, binary_targets=True))
    ref3 = _ref_focal_loss(p3, t3, alpha=1.0, gamma=2)
    assert jnp.allclose(loss3, ref3, rtol=1e-4, atol=1e-6), (loss3, ref3)

    # 4) logits=True path.
    x4 = jax.random.normal(k1, shape, jnp.float32)
    loss4 = jax.block_until_ready(
        focal_loss(x4, t, alpha=1.0, gamma=2, logits=True))
    ref4 = _ref_focal_loss(x4, t, alpha=1.0, gamma=2, logits=True)
    assert jnp.allclose(loss4, ref4, rtol=1e-5, atol=1e-6), (loss4, ref4)

    print("KERNEL_OK")
</pallas_src>

<mosaic_0001>
module attributes {stable_mosaic.version = 11 : i64} {
  func.func @_focal_loss_kernel(%arg0: i32, %arg1: i32, %arg2: memref<16x128xf32, #tpu.memory_space<vmem>>, %arg3: memref<16x128xf32, #tpu.memory_space<vmem>>, %arg4: memref<1x8x128xf32, #tpu.memory_space<vmem>>) attributes {dimension_semantics = [#tpu.dimension_semantics<parallel>, #tpu.dimension_semantics<arbitrary>], iteration_bounds = array<i64: 1, 1>, scalar_prefetch = 0 : i64, scratch_operands = 0 : i64, tpu.core_type = #tpu.core_type<tc>, window_params = [{transform_indices = @transform_0, window_bounds = array<i64: 16, 128>}, {transform_indices = @transform_1, window_bounds = array<i64: 16, 128>}, {transform_indices = @transform_2, window_bounds = array<i64: 1, 8, 128>}]} {
    %c0_i32 = arith.constant 0 : i32
    %0 = arith.cmpi eq, %arg1, %c0_i32 : i32
    %1 = arith.extui %0 : i1 to i32
    %c0_i32_0 = arith.constant 0 : i32
    %2 = arith.cmpi ne, %1, %c0_i32_0 : i32
    scf.if %2 {
      %cst_17 = arith.constant 0.000000e+00 : f32
      %33 = vector.broadcast %cst_17 : f32 to vector<1x8x128xf32>
      %c0_18 = arith.constant 0 : index
      %c0_19 = arith.constant 0 : index
      %c0_20 = arith.constant 0 : index
      %34 = vector.load %arg4[%c0_18, %c0_19, %c0_20] : memref<1x8x128xf32, #tpu.memory_space<vmem>>, vector<1x8x128xf32>
      tpu.vector_store %arg4[%c0_18, %c0_19, %c0_20], %33 {strides = array<i32>} : memref<1x8x128xf32, #tpu.memory_space<vmem>>, vector<1x8x128xf32>,
    } else {
    }
    %c0 = arith.constant 0 : index
    %c0_1 = arith.constant 0 : index
    %3 = vector.load %arg2[%c0, %c0_1] : memref<16x128xf32, #tpu.memory_space<vmem>>, vector<16x128xf32>
    %c0_2 = arith.constant 0 : index
    %c0_3 = arith.constant 0 : index
    %4 = vector.load %arg3[%c0_2, %c0_3] : memref<16x128xf32, #tpu.memory_space<vmem>>, vector<16x128xf32>
    %5 = math.log %3 : vector<16x128xf32>
    %cst = arith.constant -1.000000e+02 : f32
    %6 = vector.broadcast %cst : f32 to vector<16x128xf32>
    %7 = arith.maximumf %5, %6 : vector<16x128xf32>
    %cst_4 = arith.constant 1.000000e+00 : f32
    %8 = vector.broadcast %cst_4 : f32 to vector<16x128xf32>
    %9 = arith.subf %8, %3 : vector<16x128xf32>
    %10 = math.log %9 : vector<16x128xf32>
    %cst_5 = arith.constant -1.000000e+02 : f32
    %11 = vector.broadcast %cst_5 : f32 to vector<16x128xf32>
    %12 = arith.maximumf %10, %11 : vector<16x128xf32>
    %13 = arith.mulf %4, %7 : vector<16x128xf32>
    %cst_6 = arith.constant 1.000000e+00 : f32
    %14 = vector.broadcast %cst_6 : f32 to vector<16x128xf32>
    %15 = arith.subf %14, %4 : vector<16x128xf32>
    %16 = arith.mulf %15, %12 : vector<16x128xf32>
    %17 = arith.addf %13, %16 : vector<16x128xf32>
    %cst_7 = arith.constant 0.000000e+00 : f32
    %18 = vector.broadcast %cst_7 : f32 to vector<16x128xf32>
    %19 = arith.subf %18, %17 : vector<16x128xf32>
    %cst_8 = arith.constant 0.000000e+00 : f32
    %20 = vector.broadcast %cst_8 : f32 to vector<16x128xf32>
    %21 = arith.subf %20, %19 : vector<16x128xf32>
    %22 = math.exp %21 : vector<16x128xf32>
    %cst_9 = arith.constant 1.000000e+00 : f32
    %23 = vector.broadcast %cst_9 : f32 to vector<16x128xf32>
    %24 = arith.subf %23, %22 : vector<16x128xf32>
    %25 = arith.mulf %24, %24 : vector<16x128xf32>
    %26 = arith.mulf %25, %19 : vector<16x128xf32>
    %27 = vector.shape_cast %26 : vector<16x128xf32> to vector<2x8x128xf32>
    %cst_10 = arith.constant dense<0.000000e+00> : vector<8x128xf32>
    %28 = vector.multi_reduction <add>, %27, %cst_10 [0] : vector<2x8x128xf32> to vector<8x128xf32>
    %c0_11 = arith.constant 0 : index
    %c0_12 = arith.constant 0 : index
    %c0_13 = arith.constant 0 : index
    %29 = vector.load %arg4[%c0_11, %c0_12, %c0_13] : memref<1x8x128xf32, #tpu.memory_space<vmem>>, vector<1x8x128xf32>
    %30 = vector.shape_cast %28 : vector<8x128xf32> to vector<1x8x128xf32>
    %31 = arith.addf %29, %30 : vector<1x8x128xf32>
    %c0_14 = arith.constant 0 : index
    %c0_15 = arith.constant 0 : index
    %c0_16 = arith.constant 0 : index
    %32 = vector.load %arg4[%c0_14, %c0_15, %c0_16] : memref<1x8x128xf32, #tpu.memory_space<vmem>>, vector<1x8x128xf32>
    tpu.vector_store %arg4[%c0_14, %c0_15, %c0_16], %31 {strides = array<i32>} : memref<1x8x128xf32, #tpu.memory_space<vmem>>, vector<1x8x128xf32>,
    return
  }
  func.func @transform_0(%arg0: i32, %arg1: i32) -> (i32, i32) {
    %c1_i32 = arith.constant 1 : i32
    %0 = arith.muli %arg0, %c1_i32 : i32
    %1 = arith.addi %0, %arg1 : i32
    %c0_i32 = arith.constant 0 : i32
    %c0_i32_0 = arith.constant 0 : i32
    return %1, %c0_i32 : i32, i32
  }
  func.func @transform_1(%arg0: i32, %arg1: i32) -> (i32, i32) {
    %c1_i32 = arith.constant 1 : i32
    %0 = arith.muli %arg0, %c1_i32 : i32
    %1 = arith.addi %0, %arg1 : i32
    %c0_i32 = arith.constant 0 : i32
    %c0_i32_0 = arith.constant 0 : i32
    return %1, %c0_i32 : i32, i32
  }
  func.func @transform_2(%arg0: i32, %arg1: i32) -> (i32, i32, i32) {
    %c0_i32 = arith.constant 0 : i32
    %c0_i32_0 = arith.constant 0 : i32
    %c0_i32_1 = arith.constant 0 : i32
    return %arg0, %c0_i32, %c0_i32_0 : i32, i32, i32
  }
}

</mosaic_0001>

<llo_original>
// kernel: tpu_custom_call.1
$region0: #{tpu_custom_call.1}
  #allocation0 [shape = 'u32[]', space=smem, size = 0x4, offset = 0x4, fixed_abs, tag = 'smem constant byte address 0x4 - core index']
  #allocation1 [shape = 'u32[144,128]{1,0:T(1,128)}', space=vmem, size = 0x12000, scoped, tag = 'internal scratch']
  %s0 = inlined_call_operand.hbm [shape: f32[16,128], index: 0, kind: input, shape index: {}]
  %s1 = inlined_call_operand.hbm [shape: f32[16,128], index: 1, kind: input, shape index: {}]
  %s2 = inlined_call_operand.hbm [shape: f32[1,8,128], index: 2, kind: output, shape index: {}]
  %s3 = sld [smem:[#allocation0]]
  $region30: #{tpu_custom_call.1} parent=0
    _
  %s5 = ssub.s32 1, %s3
  %s6 = scalar_select 0, %s5, %s3
  $region1: #{tpu_custom_call.1} parent=0
    #allocation2 [shape = 'u8[8192]{0}', space=vmem, size = 0x2000, scoped, tag = 'input window, operand 0, single buffered']
    #allocation3 [shape = 's32[1]{0}', space=sflag, size = 0x4, scoped, tag = 'scoped memory for tpu_custom_call.1']
    #allocation4 [shape = 's32[1]{0}', space=sflag, size = 0x4, scoped, tag = 'scoped memory for tpu_custom_call.1']
    #allocation5 [shape = 'u8[8192]{0}', space=vmem, size = 0x2000, scoped, tag = 'input window, operand 1, single buffered']
    #allocation6 [shape = 's32[1]{0}', space=sflag, size = 0x4, scoped, tag = 'scoped memory for tpu_custom_call.1']
    #allocation7 [shape = 'u8[4096]{0}', space=vmem, size = 0x1000, scoped, tag = 'output window, operand 0, single buffered']
    %7 = vsyncpa [#allocation3], 0
    %8 = vsyncpa [#allocation6], 0
    %9 = vsyncpa [#allocation4], 0
    // Predicated region
    $region2: #{tpu_custom_call.1} parent=1 // pred_check
      _
    $region3: #{tpu_custom_call.1} parent=1 // pred_check_branch
      %11 = sbr.rel (0) target = $region5
    $region4: #{tpu_custom_call.1} parent=1 // pred_region
      %s12 = sadd.s32 0, 0
      %s13 = smul.u32 2, %s12
      %s15 = ssub.s32 256, 256
      %16 = vsyncadd [#allocation3], %s15
      %s17 = smul.addr %s13, 128
      %s18 = scalar_lea.hbm %s0, %s17
      %s19 = sshll.u32 [#allocation2], 4
      %s20 = int_to_ptr.vmem [resolvable:$true] %s19
      %25 = dma.hbm_to_vmem [thread:$0]  %s18, 256, %s20, [#allocation3], 128, 128, 8
    $region5: #{tpu_custom_call.1} parent=1 // pred_fallthru
      _
    // Predicated region
    $region6: #{tpu_custom_call.1} parent=1 // pred_check
      _
    $region7: #{tpu_custom_call.1} parent=1 // pred_check_branch
      %27 = sbr.rel (0) target = $region9
    $region8: #{tpu_custom_call.1} parent=1 // pred_region
      %s28 = sadd.s32 0, 0
      %s29 = smul.u32 2, %s28
      %s31 = ssub.s32 256, 256
      %32 = vsyncadd [#allocation6], %s31
      %s33 = smul.addr %s29, 128
      %s34 = scalar_lea.hbm %s1, %s33
      %s35 = sshll.u32 [#allocation5], 4
      %s36 = int_to_ptr.vmem [resolvable:$true] %s35
      %41 = dma.hbm_to_vmem [thread:$0]  %s34, 256, %s36, [#allocation6], 128, 128, 8
    $region9: #{tpu_custom_call.1} parent=1 // pred_fallthru
      _
    // Predicated region
    $region10: #{tpu_custom_call.1} parent=1 // pred_check
      _
    $region11: #{tpu_custom_call.1} parent=1 // pred_check_branch
      %43 = sbr.rel (0) target = $region13
    $region12: #{tpu_custom_call.1} parent=1 // pred_region
      %44 = dma.done [#allocation3], 256
    $region13: #{tpu_custom_call.1} parent=1 // pred_fallthru
      _
    // Predicated region
    $region14: #{tpu_custom_call.1} parent=1 // pred_check
      _
    $region15: #{tpu_custom_call.1} parent=1 // pred_check_branch
      %46 = sbr.rel (0) target = $region17
    $region16: #{tpu_custom_call.1} parent=1 // pred_region
      %47 = dma.done [#allocation6], 256
    $region17: #{tpu_custom_call.1} parent=1 // pred_fallthru
      _
    %s48 = sadd.s32 0, 0
    %s49 = smul.u32 2, %s48
    %s50 = sadd.s32 0, 0
    %s51 = smul.u32 2, %s50
    %p52 = scmp.eq.s32.totalorder 0, 0
    // Predicated region
    $region18: #{tpu_custom_call.1} parent=1 // pred_check
      %p53 = pneg %p52
    $region19: #{tpu_custom_call.1} parent=1 // pred_check_branch
      %55 = sbr.rel (%p53) target = $region21
    $region20: #{tpu_custom_call.1} parent=1 // pred_region
      %56 = vst [vmem:[#allocation7] sm:$0xff] 0.0
    $region21: #{tpu_custom_call.1} parent=1 // pred_fallthru
      _
    %v57 = vld [vmem:[#allocation2] sm:$0xff]
    %v58 = vld [vmem:[#allocation2 + $0x8] sm:$0xff]
    %v59 = vld [vmem:[#allocation5] sm:$0xff]
    %v60 = vld [vmem:[#allocation5 + $0x8] sm:$0xff]
    %v61 = vlog2.pop %v57
    %v62 = vmul.f32 %v61, 0.6931472
    %v63 = vlog2.pop %v58
    %v64 = vmul.f32 %v63, 0.6931472
    %v65 = vmax.f32 %v62, -100.0
    %v66 = vmax.f32 %v64, -100.0
    %v67 = vsub.f32 1.0, %v57
    %v68 = vsub.f32 1.0, %v58
    %v69 = vlog2.pop %v67
    %v70 = vmul.f32 %v69, 0.6931472
    %v71 = vlog2.pop %v68
    %v72 = vmul.f32 %v71, 0.6931472
    %v73 = vmax.f32 %v70, -100.0
    %v74 = vmax.f32 %v72, -100.0
    %v75 = vmul.f32 %v59, %v65
    %v76 = vmul.f32 %v60, %v66
    %v77 = vsub.f32 1.0, %v59
    %v78 = vsub.f32 1.0, %v60
    %v79 = vmul.f32 %v77, %v73
    %v80 = vmul.f32 %v78, %v74
    %v81 = vadd.f32 %v75, %v79
    %v82 = vadd.f32 %v76, %v80
    %v83 = vsub.f32 0.0, %v81
    %v84 = vsub.f32 0.0, %v82
    %v85 = vsub.f32 0.0, %v83
    %v86 = vsub.f32 0.0, %v84
    %v87 = vmul.f32 %v85, 1.442695
    %v88 = vpow.pop %v87
    %v89 = vmul.f32 %v86, 1.442695
    %v90 = vpow.pop %v89
    %v91 = vsub.f32 1.0, %v88
    %v92 = vsub.f32 1.0, %v90
    %v93 = vmul.f32 %v91, %v91
    %v94 = vmul.f32 %v92, %v92
    %v95 = vmul.f32 %v93, %v83
    %v96 = vmul.f32 %v94, %v84
    %v97 = vadd.f32 %v95, %v96
    %v98 = vld [vmem:[#allocation7] sm:$0xff]
    %v99 = vadd.f32 %v98, %v97
    %100 = vst [vmem:[#allocation7] sm:$0xff] %v99
    // Predicated region
    $region22: #{tpu_custom_call.1} parent=1 // pred_check
      _
    $region23: #{tpu_custom_call.1} parent=1 // pred_check_branch
      %102 = sbr.rel (0) target = $region25
    $region24: #{tpu_custom_call.1} parent=1 // pred_region
      %s104 = ssub.s32 128, 128
      %105 = vsyncadd [#allocation4], %s104
      %s107 = sshll.u32 [#allocation7], 4
      %s108 = int_to_ptr.vmem [resolvable:$true] %s107
      %110 = dma.vmem_to_hbm [thread:$0]  %s108, 128, %s2, [#allocation4]
    $region25: #{tpu_custom_call.1} parent=1 // pred_fallthru
      _
    // Predicated region
    $region26: #{tpu_custom_call.1} parent=1 // pred_check
      _
    $region27: #{tpu_custom_call.1} parent=1 // pred_check_branch
      %112 = sbr.rel (0) target = $region29
    $region28: #{tpu_custom_call.1} parent=1 // pred_region
      %113 = dma.done [#allocation4], 128
    $region29: #{tpu_custom_call.1} parent=1 // pred_fallthru
      _
    %114 = vsyncpa [#allocation3], 1
    %115 = vsyncpa [#allocation6], 1
    %116 = vsyncpa [#allocation4], 1

</llo_original>
